<compile_context>
chip_gen: v5e
topology: v5e:2x2
jax: 0.10.0
libtpu: 0.0.40
codegen_flags: <defaults>
</compile_context>

<pallas_src>
import jax
import jax.numpy as jnp
from jax.experimental import pallas as pl
from jax.experimental.pallas import tpu as pltpu

D = 100          # from the PyTorch module
D2 = 2 * D       # feature dim of H and U


def attention_flow_kernel(h_ref, u_ref, w_ref, b_ref, g_ref, q2c_ref):
    # h_ref: (BB, T, 2D) bf16     u_ref: (BB, J, 2D) bf16
    # w_ref: (3, 2D) f32          b_ref: (1, 1) f32 (SMEM)
    # g_ref: (4, BB, T, 2D) bf16  -> slabs [H, U~, H*U~, H*H~]
    # q2c_ref: (BB, T, 1) f32
    H_bf = h_ref[...]                       # (BB, T, 2D) bf16
    U_bf = u_ref[...]                       # (BB, J, 2D) bf16
    H = H_bf.astype(jnp.float32)
    U = U_bf.astype(jnp.float32)
    w_h = w_ref[0:1, :]                     # (1, 2D) f32
    w_u = w_ref[1:2, :]
    w_m = w_ref[2:3, :]
    bias = b_ref[0, 0]

    # Similarity: S[b,t,j] = w_h.H_t + w_u.U_j + H_t.(w_m*U_j) + bias
    # w_m applied on the (smaller) U operand; bf16 MXU matmul, f32 accumulate,
    # contraction over the last dims (no explicit transpose of U).
    Um_bf = (U * w_m).astype(jnp.bfloat16)                              # (BB, J, 2D)
    sm = jnp.einsum('btd,bjd->btj', H_bf, Um_bf,
                    preferred_element_type=jnp.float32)                 # (BB, T, J)
    # Rank-1 terms on the VPU (multiply + lane reduce) instead of thin matmuls.
    sh = jnp.sum(H * w_h, axis=-1, keepdims=True)                       # (BB, T, 1)
    su = jnp.sum(U * w_u, axis=-1, keepdims=True)                       # (BB, J, 1)
    S = sm + sh + jnp.swapaxes(su, -1, -2) + bias                       # (BB, T, J)

    # Context-to-query attention: softmax over J, then U_tilde = C2Q @ U.
    s_max = jnp.max(S, axis=-1, keepdims=True)                          # (BB, T, 1)
    e = jnp.exp(S - s_max)
    inv_den = pl.reciprocal(jnp.sum(e, axis=-1, keepdims=True), approx=True)
    c2q = e * inv_den                                                   # (BB, T, J)
    U_tilde = jnp.einsum('btj,bjd->btd', c2q.astype(jnp.bfloat16), U_bf,
                         preferred_element_type=jnp.float32)            # (BB, T, 2D)

    # Query-to-context attention: softmax over T of the row-wise max of S.
    m_max = jnp.max(s_max, axis=1, keepdims=True)                       # (BB, 1, 1)
    em = jnp.exp(s_max - m_max)                                         # (BB, T, 1)
    inv_q = pl.reciprocal(jnp.sum(em, axis=1, keepdims=True), approx=True)
    q2c = em * inv_q                                                    # (BB, T, 1)
    H_tilde = jnp.sum(q2c * H, axis=1, keepdims=True)                   # (BB, 1, 2D)

    # G as four lane-dense slabs; each store starts at lane 0 of its slab.
    g_ref[0] = H_bf
    g_ref[1] = U_tilde.astype(jnp.bfloat16)
    g_ref[2] = (H * U_tilde).astype(jnp.bfloat16)
    g_ref[3] = (H * H_tilde).astype(jnp.bfloat16)
    q2c_ref[...] = q2c


def attention_flow(H, U, alpha_weight, alpha_bias, *, batch_block=8):
    """H: (B, T, 2D), U: (B, J, 2D), alpha_weight: (1, 6D), alpha_bias: (1,).

    Returns (G, Q2C) with G in bfloat16 (shape (B, T, 8D)) and Q2C in float32
    (shape (B, 1, T)).
    """
    B, T, F = H.shape
    _, J, _ = U.shape
    assert F == D2 and alpha_weight.shape == (1, 6 * D)

    # Batch blocking (pad B up to a multiple of the block).
    BB = min(batch_block, B)
    Bp = pl.cdiv(B, BB) * BB
    Hb = H.astype(jnp.bfloat16)
    Ub = U.astype(jnp.bfloat16)
    if Bp != B:
        Hb = jnp.pad(Hb, ((0, Bp - B), (0, 0), (0, 0)))
        Ub = jnp.pad(Ub, ((0, Bp - B), (0, 0), (0, 0)))

    # Split the Linear(6D, 1) weight into the H / U / (H*U) sub-vectors.
    w = alpha_weight.reshape(3, D2).astype(jnp.float32)      # (3, 2D)
    b = alpha_bias.reshape(1, 1).astype(jnp.float32)         # scalar in SMEM

    out_shapes = (
        jax.ShapeDtypeStruct((4, Bp, T, D2), jnp.bfloat16),  # G slabs
        jax.ShapeDtypeStruct((Bp, T, 1), jnp.float32),       # Q2C (pre-transpose)
    )
    grid_spec = pltpu.PrefetchScalarGridSpec(
        num_scalar_prefetch=0,
        grid=(Bp // BB,),
        in_specs=[
            pl.BlockSpec((BB, T, D2), lambda bi: (bi, 0, 0)),
            pl.BlockSpec((BB, J, D2), lambda bi: (bi, 0, 0)),
            pl.BlockSpec((3, D2), lambda bi: (0, 0)),
            pl.BlockSpec((1, 1), lambda bi: (0, 0), memory_space=pltpu.SMEM),
        ],
        out_specs=[
            pl.BlockSpec((4, BB, T, D2), lambda bi: (0, bi, 0, 0)),
            pl.BlockSpec((BB, T, 1), lambda bi: (bi, 0, 0)),
        ],
    )

    # Advisory cost hint: two (T,J)x(2D) matmuls per element dominate flops,
    # HBM traffic is dominated by the bf16 G write.
    flops = Bp * (4 * T * J * D2 + 4 * T * D2 + 2 * J * D2)
    transcendentals = Bp * (T * J + T)
    bytes_accessed = (Bp * T * D2 + Bp * J * D2) * 2 + 4 * Bp * T * D2 * 2 + Bp * T * 4
    cost = pl.CostEstimate(flops=flops, transcendentals=transcendentals,
                           bytes_accessed=bytes_accessed)

    g4, q2c = pl.pallas_call(
        attention_flow_kernel,
        out_shape=out_shapes,
        grid_spec=grid_spec,
        compiler_params=pltpu.CompilerParams(
            dimension_semantics=("parallel",),
            vmem_limit_bytes=32 * 1024 * 1024,   # safe on v5e/v6e/v7x
        ),
        cost_estimate=cost,
    )(Hb, Ub, w, b)

    # Cheap XLA-side layout plumbing outside the kernel:
    # slabs (4, B, T, 2D) -> (B, T, 8D);  (B, T, 1) -> (B, 1, T).
    G = jnp.transpose(g4[:, :B], (1, 2, 0, 3)).reshape(B, T, 4 * D2)
    Q2C = jnp.transpose(q2c[:B], (0, 2, 1))
    return G, Q2C


def attention_flow_reference(H, U, alpha_weight, alpha_bias):
    """Plain-JAX f32 port of the PyTorch forward, for verification."""
    B, T, _ = H.shape
    J = U.shape[1]
    H_int = jnp.repeat(H, J, axis=1)                   # repeat_interleave(H, J, dim=1)
    U_rep = jnp.tile(U, (1, T, 1))                     # U.repeat(1, T, 1)
    HU = jnp.concatenate([H_int, U_rep, H_int * U_rep], axis=-1)
    S = HU @ alpha_weight.T + alpha_bias               # (B, T*J, 1)
    S = S.reshape(B, T, J)
    c2q = jax.nn.softmax(S, axis=-1)
    U_tilde = jnp.matmul(c2q, U)
    q2c = jax.nn.softmax(jnp.max(S, axis=-1), axis=-1)[:, None, :]   # (B, 1, T)
    H_tilde = jnp.tile(jnp.matmul(q2c, H), (1, T, 1))
    G = jnp.concatenate([H, U_tilde, H * U_tilde, H * H_tilde], axis=-1)
    return G, q2c


if __name__ == "__main__":
    key = jax.random.PRNGKey(0)
    kh, ku, kw, kb = jax.random.split(key, 4)

    B, T, J = 2, 8, 16   # small context length T and query length J
    H = jax.random.normal(kh, (B, T, D2), dtype=jnp.float32)
    U = jax.random.normal(ku, (B, J, D2), dtype=jnp.float32)
    # Deterministic synthetic parameters for alpha = nn.Linear(6D, 1).
    alpha_weight = 0.05 * jax.random.normal(kw, (1, 6 * D), dtype=jnp.float32)
    alpha_bias = 0.05 * jax.random.normal(kb, (1,), dtype=jnp.float32)

    G, Q2C = attention_flow(H, U, alpha_weight, alpha_bias)
    jax.block_until_ready((G, Q2C))

    G_ref, Q2C_ref = attention_flow_reference(H, U, alpha_weight, alpha_bias)
    assert G.shape == (B, T, 8 * D) and Q2C.shape == (B, 1, T)
    # bf16 MXU inputs / bf16 G output + approx reciprocal -> loosened tolerances.
    assert jnp.allclose(G.astype(jnp.float32), G_ref, atol=5e-2, rtol=5e-2)
    assert jnp.allclose(Q2C, Q2C_ref, atol=1e-2, rtol=2e-2)

    print("KERNEL_OK")
</pallas_src>

<mosaic_0001>
module attributes {stable_mosaic.version = 11 : i64} {
  func.func @attention_flow_kernel(%arg0: i32, %arg1: memref<2x8x200xbf16, #tpu.memory_space<vmem>>, %arg2: memref<2x16x200xbf16, #tpu.memory_space<vmem>>, %arg3: memref<3x200xf32, #tpu.memory_space<vmem>>, %arg4: memref<1x1xf32, #tpu.memory_space<smem>>, %arg5: memref<4x2x8x200xbf16, #tpu.memory_space<vmem>>, %arg6: memref<2x8x1xf32, #tpu.memory_space<vmem>>) attributes {dimension_semantics = [#tpu.dimension_semantics<parallel>], iteration_bounds = array<i64: 1>, scalar_prefetch = 0 : i64, scratch_operands = 0 : i64, tpu.core_type = #tpu.core_type<tc>, window_params = [{transform_indices = @transform_0, window_bounds = array<i64: 2, 8, 200>}, {transform_indices = @transform_1, window_bounds = array<i64: 2, 16, 200>}, {pipeline_mode = #tpu.pipeline_mode<synchronous>, transform_indices = @transform_2, window_bounds = array<i64: 3, 200>}, {transform_indices = @transform_3, window_bounds = array<i64: 1, 1>}, {transform_indices = @transform_4, window_bounds = array<i64: 4, 2, 8, 200>}, {transform_indices = @transform_5, window_bounds = array<i64: 2, 8, 1>}]} {
    %c0 = arith.constant 0 : index
    %c0_0 = arith.constant 0 : index
    %c0_1 = arith.constant 0 : index
    %0 = vector.load %arg1[%c0, %c0_0, %c0_1] : memref<2x8x200xbf16, #tpu.memory_space<vmem>>, vector<2x8x200xbf16>
    %c0_2 = arith.constant 0 : index
    %c0_3 = arith.constant 0 : index
    %c0_4 = arith.constant 0 : index
    %1 = vector.load %arg2[%c0_2, %c0_3, %c0_4] : memref<2x16x200xbf16, #tpu.memory_space<vmem>>, vector<2x16x200xbf16>
    %2 = arith.extf %0 : vector<2x8x200xbf16> to vector<2x8x200xf32>
    %3 = arith.extf %1 : vector<2x16x200xbf16> to vector<2x16x200xf32>
    %c0_5 = arith.constant 0 : index
    %c0_6 = arith.constant 0 : index
    %4 = vector.load %arg3[%c0_5, %c0_6] : memref<3x200xf32, #tpu.memory_space<vmem>>, vector<1x200xf32>
    %c1 = arith.constant 1 : index
    %c0_7 = arith.constant 0 : index
    %5 = vector.load %arg3[%c1, %c0_7] : memref<3x200xf32, #tpu.memory_space<vmem>>, vector<1x200xf32>
    %c2 = arith.constant 2 : index
    %c0_8 = arith.constant 0 : index
    %6 = vector.load %arg3[%c2, %c0_8] : memref<3x200xf32, #tpu.memory_space<vmem>>, vector<1x200xf32>
    %c0_9 = arith.constant 0 : index
    %c0_10 = arith.constant 0 : index
    %7 = memref.load %arg4[%c0_9, %c0_10] : memref<1x1xf32, #tpu.memory_space<smem>>
    %8 = vector.shape_cast %6 : vector<1x200xf32> to vector<1x1x200xf32>
    %9 = vector.broadcast %8 : vector<1x1x200xf32> to vector<2x16x200xf32>
    %10 = arith.mulf %3, %9 : vector<2x16x200xf32>
    %11 = arith.truncf %10 : vector<2x16x200xf32> to vector<2x16x200xbf16>
    "tpu.trace_start"() <{level = 10 : i32, message = "btd,bjd->btj"}> : () -> ()
    %cst = arith.constant dense<0.000000e+00> : vector<2x8x16xf32>
    %12 = tpu.matmul %0, %11, %cst {dimension_numbers = #tpu.dot_dimension_numbers<[2], [2], [1], [1], [0, 0, 0, 1, 1, 1], [0], [0]>} : vector<2x8x200xbf16>, vector<2x16x200xbf16>, vector<2x8x16xf32> -> vector<2x8x16xf32>
    "tpu.trace_stop"() : () -> ()
    %13 = vector.shape_cast %4 : vector<1x200xf32> to vector<1x1x200xf32>
    %14 = vector.broadcast %13 : vector<1x1x200xf32> to vector<2x8x200xf32>
    %15 = arith.mulf %2, %14 : vector<2x8x200xf32>
    %cst_11 = arith.constant dense<0.000000e+00> : vector<2x8xf32>
    %16 = vector.multi_reduction <add>, %15, %cst_11 [2] : vector<2x8x200xf32> to vector<2x8xf32>
    %17 = vector.shape_cast %16 : vector<2x8xf32> to vector<2x8x1xf32>
    %18 = vector.shape_cast %5 : vector<1x200xf32> to vector<1x1x200xf32>
    %19 = vector.broadcast %18 : vector<1x1x200xf32> to vector<2x16x200xf32>
    %20 = arith.mulf %3, %19 : vector<2x16x200xf32>
    %cst_12 = arith.constant dense<0.000000e+00> : vector<2x16xf32>
    %21 = vector.multi_reduction <add>, %20, %cst_12 [2] : vector<2x16x200xf32> to vector<2x16xf32>
    %22 = vector.shape_cast %21 : vector<2x16xf32> to vector<2x16x1xf32>
    %23 = vector.broadcast %17 : vector<2x8x1xf32> to vector<2x8x16xf32>
    %24 = arith.addf %12, %23 : vector<2x8x16xf32>
    %25 = tpu.transpose %22, [0, 2, 1] : vector<2x16x1xf32> -> vector<2x1x16xf32>
    %26 = vector.broadcast %25 : vector<2x1x16xf32> to vector<2x8x16xf32>
    %27 = arith.addf %24, %26 : vector<2x8x16xf32>
    %28 = vector.broadcast %7 : f32 to vector<2x8x16xf32>
    %29 = arith.addf %27, %28 : vector<2x8x16xf32>
    %cst_13 = arith.constant dense<0xFF800000> : vector<2x8xf32>
    %30 = vector.multi_reduction <maximumf>, %29, %cst_13 [2] : vector<2x8x16xf32> to vector<2x8xf32>
    %31 = vector.shape_cast %30 : vector<2x8xf32> to vector<2x8x1xf32>
    %32 = vector.broadcast %31 : vector<2x8x1xf32> to vector<2x8x16xf32>
    %33 = arith.subf %29, %32 : vector<2x8x16xf32>
    %34 = math.exp %33 : vector<2x8x16xf32>
    %cst_14 = arith.constant dense<0.000000e+00> : vector<2x8xf32>
    %35 = vector.multi_reduction <add>, %34, %cst_14 [2] : vector<2x8x16xf32> to vector<2x8xf32>
    %36 = vector.shape_cast %35 : vector<2x8xf32> to vector<2x8x1xf32>
    %37 = tpu.reciprocal %36 {approx = true} : vector<2x8x1xf32> -> vector<2x8x1xf32>
    %38 = vector.broadcast %37 : vector<2x8x1xf32> to vector<2x8x16xf32>
    %39 = arith.mulf %34, %38 : vector<2x8x16xf32>
    %40 = arith.truncf %39 : vector<2x8x16xf32> to vector<2x8x16xbf16>
    "tpu.trace_start"() <{level = 10 : i32, message = "btj,bjd->btd"}> : () -> ()
    %cst_15 = arith.constant dense<0.000000e+00> : vector<2x8x200xf32>
    %41 = tpu.matmul %40, %1, %cst_15 {dimension_numbers = #tpu.dot_dimension_numbers<[2], [1], [1], [2], [0, 0, 0, 1, 1, 2], [0], [0]>} : vector<2x8x16xbf16>, vector<2x16x200xbf16>, vector<2x8x200xf32> -> vector<2x8x200xf32>
    "tpu.trace_stop"() : () -> ()
    %cst_16 = arith.constant dense<0xFF800000> : vector<2x1xf32>
    %42 = vector.multi_reduction <maximumf>, %31, %cst_16 [1] : vector<2x8x1xf32> to vector<2x1xf32>
    %43 = vector.shape_cast %42 : vector<2x1xf32> to vector<2x1x1xf32>
    %44 = vector.broadcast %43 : vector<2x1x1xf32> to vector<2x8x1xf32>
    %45 = arith.subf %31, %44 : vector<2x8x1xf32>
    %46 = math.exp %45 : vector<2x8x1xf32>
    %cst_17 = arith.constant dense<0.000000e+00> : vector<2x1xf32>
    %47 = vector.multi_reduction <add>, %46, %cst_17 [1] : vector<2x8x1xf32> to vector<2x1xf32>
    %48 = vector.shape_cast %47 : vector<2x1xf32> to vector<2x1x1xf32>
    %49 = tpu.reciprocal %48 {approx = true} : vector<2x1x1xf32> -> vector<2x1x1xf32>
    %50 = vector.broadcast %49 : vector<2x1x1xf32> to vector<2x8x1xf32>
    %51 = arith.mulf %46, %50 : vector<2x8x1xf32>
    %52 = vector.broadcast %51 : vector<2x8x1xf32> to vector<2x8x200xf32>
    %53 = arith.mulf %52, %2 : vector<2x8x200xf32>
    %cst_18 = arith.constant dense<0.000000e+00> : vector<2x200xf32>
    %54 = vector.multi_reduction <add>, %53, %cst_18 [1] : vector<2x8x200xf32> to vector<2x200xf32>
    %55 = vector.shape_cast %54 : vector<2x200xf32> to vector<2x1x200xf32>
    %c0_19 = arith.constant 0 : index
    %c0_20 = arith.constant 0 : index
    %c0_21 = arith.constant 0 : index
    %c0_22 = arith.constant 0 : index
    %56 = vector.load %arg5[%c0_19, %c0_20, %c0_21, %c0_22] : memref<4x2x8x200xbf16, #tpu.memory_space<vmem>>, vector<1x2x8x200xbf16>
    %57 = vector.shape_cast %56 : vector<1x2x8x200xbf16> to vector<2x8x200xbf16>
    %58 = vector.shape_cast %0 : vector<2x8x200xbf16> to vector<1x2x8x200xbf16>
    tpu.vector_store %arg5[%c0_19, %c0_20, %c0_21, %c0_22], %58 {strides = array<i32>} : memref<4x2x8x200xbf16, #tpu.memory_space<vmem>>, vector<1x2x8x200xbf16>,
    %59 = arith.truncf %41 : vector<2x8x200xf32> to vector<2x8x200xbf16>
    %c1_23 = arith.constant 1 : index
    %c0_24 = arith.constant 0 : index
    %c0_25 = arith.constant 0 : index
    %c0_26 = arith.constant 0 : index
    %60 = vector.load %arg5[%c1_23, %c0_24, %c0_25, %c0_26] : memref<4x2x8x200xbf16, #tpu.memory_space<vmem>>, vector<1x2x8x200xbf16>
    %61 = vector.shape_cast %60 : vector<1x2x8x200xbf16> to vector<2x8x200xbf16>
    %62 = vector.shape_cast %59 : vector<2x8x200xbf16> to vector<1x2x8x200xbf16>
    tpu.vector_store %arg5[%c1_23, %c0_24, %c0_25, %c0_26], %62 {strides = array<i32>} : memref<4x2x8x200xbf16, #tpu.memory_space<vmem>>, vector<1x2x8x200xbf16>,
    %63 = arith.mulf %2, %41 : vector<2x8x200xf32>
    %64 = arith.truncf %63 : vector<2x8x200xf32> to vector<2x8x200xbf16>
    %c2_27 = arith.constant 2 : index
    %c0_28 = arith.constant 0 : index
    %c0_29 = arith.constant 0 : index
    %c0_30 = arith.constant 0 : index
    %65 = vector.load %arg5[%c2_27, %c0_28, %c0_29, %c0_30] : memref<4x2x8x200xbf16, #tpu.memory_space<vmem>>, vector<1x2x8x200xbf16>
    %66 = vector.shape_cast %65 : vector<1x2x8x200xbf16> to vector<2x8x200xbf16>
    %67 = vector.shape_cast %64 : vector<2x8x200xbf16> to vector<1x2x8x200xbf16>
    tpu.vector_store %arg5[%c2_27, %c0_28, %c0_29, %c0_30], %67 {strides = array<i32>} : memref<4x2x8x200xbf16, #tpu.memory_space<vmem>>, vector<1x2x8x200xbf16>,
    %68 = vector.broadcast %55 : vector<2x1x200xf32> to vector<2x8x200xf32>
    %69 = arith.mulf %2, %68 : vector<2x8x200xf32>
    %70 = arith.truncf %69 : vector<2x8x200xf32> to vector<2x8x200xbf16>
    %c3 = arith.constant 3 : index
    %c0_31 = arith.constant 0 : index
    %c0_32 = arith.constant 0 : index
    %c0_33 = arith.constant 0 : index
    %71 = vector.load %arg5[%c3, %c0_31, %c0_32, %c0_33] : memref<4x2x8x200xbf16, #tpu.memory_space<vmem>>, vector<1x2x8x200xbf16>
    %72 = vector.shape_cast %71 : vector<1x2x8x200xbf16> to vector<2x8x200xbf16>
    %73 = vector.shape_cast %70 : vector<2x8x200xbf16> to vector<1x2x8x200xbf16>
    tpu.vector_store %arg5[%c3, %c0_31, %c0_32, %c0_33], %73 {strides = array<i32>} : memref<4x2x8x200xbf16, #tpu.memory_space<vmem>>, vector<1x2x8x200xbf16>,
    %c0_34 = arith.constant 0 : index
    %c0_35 = arith.constant 0 : index
    %c0_36 = arith.constant 0 : index
    %74 = vector.load %arg6[%c0_34, %c0_35, %c0_36] : memref<2x8x1xf32, #tpu.memory_space<vmem>>, vector<2x8x1xf32>
    tpu.vector_store %arg6[%c0_34, %c0_35, %c0_36], %51 {strides = array<i32>} : memref<2x8x1xf32, #tpu.memory_space<vmem>>, vector<2x8x1xf32>,
    return
  }
  func.func @transform_0(%arg0: i32) -> (i32, i32, i32) {
    %c0_i32 = arith.constant 0 : i32
    %c0_i32_0 = arith.constant 0 : i32
    %c0_i32_1 = arith.constant 0 : i32
    return %arg0, %c0_i32, %c0_i32_0 : i32, i32, i32
  }
  func.func @transform_1(%arg0: i32) -> (i32, i32, i32) {
    %c0_i32 = arith.constant 0 : i32
    %c0_i32_0 = arith.constant 0 : i32
    %c0_i32_1 = arith.constant 0 : i32
    return %arg0, %c0_i32, %c0_i32_0 : i32, i32, i32
  }
  func.func @transform_2(%arg0: i32) -> (i32, i32) {
    %c0_i32 = arith.constant 0 : i32
    %c0_i32_0 = arith.constant 0 : i32
    %c0_i32_1 = arith.constant 0 : i32
    return %c0_i32, %c0_i32_0 : i32, i32
  }
  func.func @transform_3(%arg0: i32) -> (i32, i32) {
    %c0_i32 = arith.constant 0 : i32
    %c0_i32_0 = arith.constant 0 : i32
    %c0_i32_1 = arith.constant 0 : i32
    return %c0_i32, %c0_i32_0 : i32, i32
  }
  func.func @transform_4(%arg0: i32) -> (i32, i32, i32, i32) {
    %c0_i32 = arith.constant 0 : i32
    %c0_i32_0 = arith.constant 0 : i32
    %c0_i32_1 = arith.constant 0 : i32
    %c0_i32_2 = arith.constant 0 : i32
    return %c0_i32, %arg0, %c0_i32_0, %c0_i32_1 : i32, i32, i32, i32
  }
  func.func @transform_5(%arg0: i32) -> (i32, i32, i32) {
    %c0_i32 = arith.constant 0 : i32
    %c0_i32_0 = arith.constant 0 : i32
    %c0_i32_1 = arith.constant 0 : i32
    return %arg0, %c0_i32, %c0_i32_0 : i32, i32, i32
  }
}

</mosaic_0001>

<llo_original>
// kernel: tpu_custom_call.1
$region0: #{tpu_custom_call.1}
  #allocation0 [shape = 'u32[]', space=smem, size = 0x4, offset = 0x4, fixed_abs, tag = 'smem constant byte address 0x4 - core index']
  #allocation1 [shape = 'u32[72,128]{1,0:T(1,128)}', space=vmem, size = 0x9000, scoped, tag = 'internal scratch']
  #allocation2 [shape = 'f32[1,1]{1,0:T(1,128)S(6)}', space=smem, size = 0x200, scoped, tag = 'scoped memory for tpu_custom_call.1']
  %s0 = inlined_call_operand.hbm [shape: bf16[2,8,200], index: 0, kind: input, shape index: {}]
  %s1 = inlined_call_operand.hbm [shape: bf16[2,16,200], index: 1, kind: input, shape index: {}]
  %s2 = inlined_call_operand.hbm [shape: f32[3,200], index: 2, kind: input, shape index: {}]
  %s3 = inlined_call_operand.<no memory space> [shape: f32[1,1], index: 3, kind: input, shape index: {}]
  %s4 = inlined_call_operand.hbm [shape: bf16[4,2,8,200], index: 4, kind: output, shape index: {0}]
  %s5 = inlined_call_operand.vmem [shape: f32[2,8,1], index: 5, kind: output, shape index: {1}]
  %6 = xla_tuple %s4, %s5
  %s7 = sld [smem:[#allocation0]]
  $region46: #{tpu_custom_call.1} parent=0
    _
  %s9 = ssub.s32 1, %s7
  %s10 = scalar_select 0, %s9, %s7
  %11 = sst [smem:[#allocation2]] %s3
  $region1: #{tpu_custom_call.1} parent=0
    #allocation3 [shape = 'u8[8192]{0}', space=vmem, size = 0x2000, scoped, tag = 'input window, operand 0, single buffered']
    #allocation4 [shape = 's32[1]{0}', space=sflag, size = 0x4, scoped, tag = 'scoped memory for tpu_custom_call.1']
    #allocation5 [shape = 's32[1]{0}', space=sflag, size = 0x4, scoped, tag = 'scoped memory for tpu_custom_call.1']
    #allocation6 [shape = 'u8[16384]{0}', space=vmem, size = 0x4000, scoped, tag = 'input window, operand 1, single buffered']
    #allocation7 [shape = 's32[1]{0}', space=sflag, size = 0x4, scoped, tag = 'scoped memory for tpu_custom_call.1']
    #allocation8 [shape = 'u8[4096]{0}', space=vmem, size = 0x1000, scoped, tag = 'input window, operand 2, single buffered']
    #allocation9 [shape = 'u8[32768]{0}', space=vmem, size = 0x8000, scoped, tag = 'output window, operand 0, single buffered']
    %12 = vsyncpa [#allocation4], 0
    %13 = vsyncpa [#allocation7], 0
    %14 = vsyncpa [#allocation5], 0
    // Predicated region
    $region2: #{tpu_custom_call.1} parent=1 // pred_check
      _
    $region3: #{tpu_custom_call.1} parent=1 // pred_check_branch
      %16 = sbr.rel (0) target = $region5
    $region4: #{tpu_custom_call.1} parent=1 // pred_region
      %18 = vsyncadd [#allocation4], 0
      %s19 = sshll.u32 %s0, 4
      %s20 = int_to_ptr.hbm [resolvable:$true] %s19
      %s21 = sshll.u32 [#allocation3], 4
      %s22 = int_to_ptr.vmem [resolvable:$true] %s21
      %27 = dma.hbm_to_vmem [thread:$0]  %s20, 256, %s22, [#allocation4], 128, 128, 8
    $region5: #{tpu_custom_call.1} parent=1 // pred_fallthru
      _
    // Predicated region
    $region6: #{tpu_custom_call.1} parent=1 // pred_check
      _
    $region7: #{tpu_custom_call.1} parent=1 // pred_check_branch
      %29 = sbr.rel (0) target = $region9
    $region8: #{tpu_custom_call.1} parent=1 // pred_region
      %31 = vsyncadd [#allocation7], 0
      %s32 = sshll.u32 %s1, 4
      %s33 = int_to_ptr.hbm [resolvable:$true] %s32
      %s34 = sshll.u32 [#allocation6], 4
      %s35 = int_to_ptr.vmem [resolvable:$true] %s34
      %40 = dma.hbm_to_vmem [thread:$0]  %s33, 512, %s35, [#allocation7], 128, 128, 8
    $region9: #{tpu_custom_call.1} parent=1 // pred_fallthru
      _
    // Predicated region
    $region10: #{tpu_custom_call.1} parent=1 // pred_check
      _
    $region11: #{tpu_custom_call.1} parent=1 // pred_check_branch
      %42 = sbr.rel (0) target = $region13
    $region12: #{tpu_custom_call.1} parent=1 // pred_region
      %44 = vsyncadd [#allocation7], 0
      %s46 = sshll.u32 %s2, 4
      %s47 = int_to_ptr.hbm [resolvable:$true] %s46
      %s48 = sshll.u32 [#allocation8], 4
      %s49 = int_to_ptr.vmem [resolvable:$true] %s48
      %51 = dma.hbm_to_vmem [thread:$0]  %s47, 128, %s49, [#allocation7]
    $region13: #{tpu_custom_call.1} parent=1 // pred_fallthru
      _
    // Predicated region
    $region14: #{tpu_custom_call.1} parent=1 // pred_check
      _
    $region15: #{tpu_custom_call.1} parent=1 // pred_check_branch
      %53 = sbr.rel (0) target = $region17
    $region16: #{tpu_custom_call.1} parent=1 // pred_region
      _
    $region17: #{tpu_custom_call.1} parent=1 // pred_fallthru
      _
    // Predicated region
    $region18: #{tpu_custom_call.1} parent=1 // pred_check
      _
    $region19: #{tpu_custom_call.1} parent=1 // pred_check_branch
      %55 = sbr.rel (0) target = $region21
    $region20: #{tpu_custom_call.1} parent=1 // pred_region
      %57 = dma.done [#allocation4], 256
    $region21: #{tpu_custom_call.1} parent=1 // pred_fallthru
      _
    // Predicated region
    $region22: #{tpu_custom_call.1} parent=1 // pred_check
      _
    $region23: #{tpu_custom_call.1} parent=1 // pred_check_branch
      %59 = sbr.rel (0) target = $region25
    $region24: #{tpu_custom_call.1} parent=1 // pred_region
      %61 = dma.done [#allocation7], 512
    $region25: #{tpu_custom_call.1} parent=1 // pred_fallthru
      _
    // Predicated region
    $region26: #{tpu_custom_call.1} parent=1 // pred_check
      _
    $region27: #{tpu_custom_call.1} parent=1 // pred_check_branch
      %63 = sbr.rel (0) target = $region29
    $region28: #{tpu_custom_call.1} parent=1 // pred_region
      %65 = dma.done [#allocation7], 128
    $region29: #{tpu_custom_call.1} parent=1 // pred_fallthru
      _
    %v67 = vld [vmem:[#allocation3] sm:$0xff]
    %v68 = vld [vmem:[#allocation3 + $0x8] sm:$0xff]
    %v69 = vld [vmem:[#allocation6] sm:$0xff]
    %v70 = vld [vmem:[#allocation6 + $0x8] sm:$0xff]
    %v71 = vld [vmem:[#allocation6 + $0x10] sm:$0xff]
    %v72 = vld [vmem:[#allocation6 + $0x18] sm:$0xff]
    %v73 = vunpack.c.l.bf16 %v67
    %v74 = vunpack.c.h.bf16 %v67
    %v75 = vunpack.c.l.bf16 %v68
    %v76 = vunpack.c.h.bf16 %v68
    %v77 = vunpack.c.l.bf16 %v69
    %v78 = vunpack.c.h.bf16 %v69
    %v79 = vunpack.c.l.bf16 %v70
    %v80 = vunpack.c.h.bf16 %v70
    %v81 = vunpack.c.l.bf16 %v71
    %v82 = vunpack.c.h.bf16 %v71
    %v83 = vunpack.c.l.bf16 %v72
    %v84 = vunpack.c.h.bf16 %v72
    %v85 = vld [vmem:[#allocation8] ss:$4 sm:$0x3]
    %s86 = scalar_lea.vmem [#allocation8], 1
    %v87 = vld [vmem:[%s86] ss:$4 sm:$0x3]
    %s88 = scalar_lea.vmem [#allocation8], 2
    %v89 = vld [vmem:[%s88] ss:$4 sm:$0x3]
    %s90 = sld [smem:[#allocation2]]
    %v92 = vperm.slane %v89, 0
    %v93 = vperm.slane %v89, 1
    %v96 = vmul.f32 %v77, %v92
    %v97 = vmul.f32 %v78, %v93
    %v98 = vmul.f32 %v79, %v92
    %v99 = vmul.f32 %v80, %v93
    %v100 = vmul.f32 %v81, %v92
    %v101 = vmul.f32 %v82, %v93
    %v102 = vmul.f32 %v83, %v92
    %v103 = vmul.f32 %v84, %v93
    %v104 = vpack.c.bf16 %v97, %v96
    %v105 = vpack.c.bf16 %v99, %v98
    %v106 = vpack.c.bf16 %v101, %v100
    %v107 = vpack.c.bf16 %v103, %v102
    %v109 = vperm.slane %v85, 0
    %v110 = vperm.slane %v85, 1
    %v113 = vmul.f32 %v73, %v109
    %v114 = vmul.f32 %v74, %v110
    %v115 = vmul.f32 %v75, %v109
    %v116 = vmul.f32 %v76, %v110
    %vm117 = vcmask 588800
    %v118 = vsel %vm117, %v114, 0.0
    %v119 = vadd.f32 %v113, %v118
    %120 = vadd.xlane.f32.xlu0 %v119
    %v121 = vpop.xlane.xlu0 %120
    %v122 = vsel %vm117, %v116, 0.0
    %v123 = vadd.f32 %v115, %v122
    %124 = vadd.xlane.f32.xlu0 %v123
    %v125 = vpop.xlane.xlu0 %124
    %v127 = vperm.slane %v87, 0
    %v128 = vperm.slane %v87, 1
    %v131 = vmul.f32 %v77, %v127
    %v132 = vmul.f32 %v78, %v128
    %v133 = vmul.f32 %v79, %v127
    %v134 = vmul.f32 %v80, %v128
    %v135 = vmul.f32 %v81, %v127
    %v136 = vmul.f32 %v82, %v128
    %v137 = vmul.f32 %v83, %v127
    %v138 = vmul.f32 %v84, %v128
    %v139 = vsel %vm117, %v132, 0.0
    %v140 = vadd.f32 %v131, %v139
    %141 = vadd.xlane.f32.xlu0 %v140
    %v142 = vpop.xlane.xlu0 %141
    %v143 = vsel %vm117, %v134, 0.0
    %v144 = vadd.f32 %v133, %v143
    %145 = vadd.xlane.f32.xlu0 %v144
    %v146 = vpop.xlane.xlu0 %145
    %v147 = vsel %vm117, %v136, 0.0
    %v148 = vadd.f32 %v135, %v147
    %149 = vadd.xlane.f32.xlu0 %v148
    %v150 = vpop.xlane.xlu0 %149
    %v151 = vsel %vm117, %v138, 0.0
    %v152 = vadd.f32 %v137, %v151
    %153 = vadd.xlane.f32.xlu0 %v152
    %v154 = vpop.xlane.xlu0 %153
    %v156 = vunpack.c.l.b16 %v67
    %v157 = vunpack.c.h.b16 %v67
    %v158 = vpack.c.b16 %v156, %v156
    %v159 = vpack.c.b16 %v157, %v157
    %v163 = vunpack.c.l.b16 %v104
    %v164 = vunpack.c.h.b16 %v104
    %v165 = vunpack.c.l.b16 %v105
    %v166 = vunpack.c.h.b16 %v105
    %v167 = vpack.c.b16 %v165, %v163
    %v168 = vpack.c.b16 %v166, %v164
    %v171 = vsel %vm117, %v159, 0
    %v174 = vsel %vm117, %v168, 0
    %176 = vmatpush.bf16.xpose.msra.mxu0 0
    %177 = vmatpush.bf16.xpose.msra.mxu0 0
    %178 = vmatpush.bf16.xpose.msra.mxu0 0
    %179 = vmatpush.bf16.xpose.msra.mxu0 0
    %180 = vmatpush.bf16.xpose.msra.mxu0 0
    %181 = vmatpush.bf16.xpose.msra.mxu0 0
    %182 = vmatpush.bf16.xpose.msra.mxu0 0
    %183 = vmatpush.bf16.xpose.msra.mxu0 %v167
    %184 = vmatmul.bf16.gmra.mxu0 %v158
    %v185 = vpop.f32.mrf.mxu0
    %v186 = vadd.f32 %v121, %v185
    %v187 = vpop.f32.mrf.mxu0
    %188 = vdwg.mxu0
    %189 = vmatpush.bf16.xpose.msra.mxu0 0
    %190 = vmatpush.bf16.xpose.msra.mxu0 0
    %191 = vmatpush.bf16.xpose.msra.mxu0 0
    %192 = vmatpush.bf16.xpose.msra.mxu0 0
    %193 = vmatpush.bf16.xpose.msra.mxu0 0
    %194 = vmatpush.bf16.xpose.msra.mxu0 0
    %195 = vmatpush.bf16.xpose.msra.mxu0 0
    %196 = vmatpush.bf16.xpose.msra.mxu0 %v174
    %197 = vmatmul.bf16.gmra.mxu0 %v171
    %v198 = vpop.f32.mrf.mxu0
    %v199 = vadd.f32 %v186, %v198
    %v200 = vpop.f32.mrf.mxu0
    %201 = vdwg.mxu0
    %v203 = vunpack.c.l.b16 %v68
    %v204 = vunpack.c.h.b16 %v68
    %v205 = vpack.c.b16 %v203, %v203
    %v206 = vpack.c.b16 %v204, %v204
    %v210 = vunpack.c.l.b16 %v106
    %v211 = vunpack.c.h.b16 %v106
    %v212 = vunpack.c.l.b16 %v107
    %v213 = vunpack.c.h.b16 %v107
    %v214 = vpack.c.b16 %v212, %v210
    %v215 = vpack.c.b16 %v213, %v211
    %v218 = vsel %vm117, %v206, 0
    %v221 = vsel %vm117, %v215, 0
    %223 = vmatpush.bf16.xpose.msra.mxu0 0
    %224 = vmatpush.bf16.xpose.msra.mxu0 0
    %225 = vmatpush.bf16.xpose.msra.mxu0 0
    %226 = vmatpush.bf16.xpose.msra.mxu0 0
    %227 = vmatpush.bf16.xpose.msra.mxu0 0
    %228 = vmatpush.bf16.xpose.msra.mxu0 0
    %229 = vmatpush.bf16.xpose.msra.mxu0 0
    %230 = vmatpush.bf16.xpose.msra.mxu0 %v214
    %231 = vmatmul.bf16.gmra.mxu0 %v205
    %v232 = vpop.f32.mrf.mxu0
    %v233 = vadd.f32 %v125, %v232
    %v234 = vpop.f32.mrf.mxu0
    %235 = vdwg.mxu0
    %236 = vmatpush.bf16.xpose.msra.mxu0 0
    %237 = vmatpush.bf16.xpose.msra.mxu0 0
    %238 = vmatpush.bf16.xpose.msra.mxu0 0
    %239 = vmatpush.bf16.xpose.msra.mxu0 0
    %240 = vmatpush.bf16.xpose.msra.mxu0 0
    %241 = vmatpush.bf16.xpose.msra.mxu0 0
    %242 = vmatpush.bf16.xpose.msra.mxu0 0
    %243 = vmatpush.bf16.xpose.msra.mxu0 %v221
    %244 = vmatmul.bf16.gmra.mxu0 %v218
    %v245 = vpop.f32.mrf.mxu0
    %v246 = vadd.f32 %v233, %v245
    %v247 = vpop.f32.mrf.mxu0
    %248 = vdwg.mxu0
    %249 = vxpose.xlu0.b32.start [1/16] %v142, 128
    %250 = vxpose.xlu0.b32.cont [2/16] %v146, 128
    %251 = vxpose.xlu0.b32.cont [3/16] 0.0, 128
    %252 = vxpose.xlu0.b32.cont [4/16] 0.0, 128
    %253 = vxpose.xlu0.b32.cont [5/16] 0.0, 128
    %254 = vxpose.xlu0.b32.cont [6/16] 0.0, 128
    %255 = vxpose.xlu0.b32.cont [7/16] 0.0, 128
    %256 = vxpose.xlu0.b32.cont [8/16] 0.0, 128
    %257 = vxpose.xlu0.b32.cont [9/16] 0.0, 128
    %258 = vxpose.xlu0.b32.cont [10/16] 0.0, 128
    %259 = vxpose.xlu0.b32.cont [11/16] 0.0, 128
    %260 = vxpose.xlu0.b32.cont [12/16] 0.0, 128
    %261 = vxpose.xlu0.b32.cont [13/16] 0.0, 128
    %262 = vxpose.xlu0.b32.cont [14/16] 0.0, 128
    %263 = vxpose.xlu0.b32.cont [15/16] 0.0, 128
    %264 = vxpose.xlu0.b32.end [16/16] 0.0, 128
    %v265 = vpop.trf.xlu0
    %v266 = vpop.trf.xlu0
    %v267 = vpop.trf.xlu0
    %v268 = vpop.trf.xlu0
    %v269 = vpop.trf.xlu0
    %v270 = vpop.trf.xlu0
    %v271 = vpop.trf.xlu0
    %v272 = vpop.trf.xlu0
    %v273 = vpop.trf.xlu0
    %v274 = vpop.trf.xlu0
    %v275 = vpop.trf.xlu0
    %v276 = vpop.trf.xlu0
    %v277 = vpop.trf.xlu0
    %v278 = vpop.trf.xlu0
    %v279 = vpop.trf.xlu0
    %v280 = vpop.trf.xlu0
    %281 = vxpose.xlu0.b32.start [1/16] %v150, 128
    %282 = vxpose.xlu0.b32.cont [2/16] %v154, 128
    %283 = vxpose.xlu0.b32.cont [3/16] 0.0, 128
    %284 = vxpose.xlu0.b32.cont [4/16] 0.0, 128
    %285 = vxpose.xlu0.b32.cont [5/16] 0.0, 128
    %286 = vxpose.xlu0.b32.cont [6/16] 0.0, 128
    %287 = vxpose.xlu0.b32.cont [7/16] 0.0, 128
    %288 = vxpose.xlu0.b32.cont [8/16] 0.0, 128
    %289 = vxpose.xlu0.b32.cont [9/16] 0.0, 128
    %290 = vxpose.xlu0.b32.cont [10/16] 0.0, 128
    %291 = vxpose.xlu0.b32.cont [11/16] 0.0, 128
    %292 = vxpose.xlu0.b32.cont [12/16] 0.0, 128
    %293 = vxpose.xlu0.b32.cont [13/16] 0.0, 128
    %294 = vxpose.xlu0.b32.cont [14/16] 0.0, 128
    %295 = vxpose.xlu0.b32.cont [15/16] 0.0, 128
    %296 = vxpose.xlu0.b32.end [16/16] 0.0, 128
    %v297 = vpop.trf.xlu0
    %v298 = vpop.trf.xlu0
    %v299 = vpop.trf.xlu0
    %v300 = vpop.trf.xlu0
    %v301 = vpop.trf.xlu0
    %v302 = vpop.trf.xlu0
    %v303 = vpop.trf.xlu0
    %v304 = vpop.trf.xlu0
    %v305 = vpop.trf.xlu0
    %v306 = vpop.trf.xlu0
    %v307 = vpop.trf.xlu0
    %v308 = vpop.trf.xlu0
    %v309 = vpop.trf.xlu0
    %v310 = vpop.trf.xlu0
    %v311 = vpop.trf.xlu0
    %v312 = vpop.trf.xlu0
    %v313 = vperm.slane %v265, 0
    %v314 = vperm.slane %v297, 0
    %v315 = vadd.f32 %v199, %v313
    %v316 = vadd.f32 %v246, %v314
    %v317 = vstv %s90
    %v318 = vadd.f32 %v315, %v317
    %v319 = vadd.f32 %v316, %v317
    %vm320 = vcmask 130048
    %v321 = vsel %vm320, %v318, -inf
    %322 = vmax.xlane.f32.xlu0 %v321
    %v323 = vpop.xlane.xlu0 %322
    %v324 = vsel %vm320, %v319, -inf
    %325 = vmax.xlane.f32.xlu0 %v324
    %v326 = vpop.xlane.xlu0 %325
    %v327 = vsub.f32 %v318, %v323
    %v328 = vsub.f32 %v319, %v326
    %v329 = vmul.f32 %v327, 1.442695
    %v330 = vpow.pop %v329
    %v331 = vmul.f32 %v328, 1.442695
    %v332 = vpow.pop %v331
    %v333 = vsel %vm320, %v330, 0.0
    %334 = vadd.xlane.f32.xlu0 %v333
    %v335 = vpop.xlane.xlu0 %334
    %v336 = vsel %vm320, %v332, 0.0
    %337 = vadd.xlane.f32.xlu0 %v336
    %v338 = vpop.xlane.xlu0 %337
    %v339 = vrcp.pop %v335
    %v340 = vrcp.pop %v338
    %v341 = vmul.f32 %v330, %v339
    %v342 = vmul.f32 %v332, %v340
    %v343 = vpack.c.bf16 %v341, %v341
    %v344 = vpack.c.bf16 %v342, %v342
    %v347 = vunpack.c.l.b16 %v69
    %v348 = vunpack.c.h.b16 %v69
    %v349 = vunpack.c.l.b16 %v70
    %v350 = vunpack.c.h.b16 %v70
    %v351 = vpack.c.b16 %v349, %v347
    %v352 = vpack.c.b16 %v350, %v348
    %v356 = vsel %vm320, %v343, 0
    %358 = vmatpush.bf16.msra.mxu0 0
    %359 = vmatpush.bf16.msra.mxu0 0
    %360 = vmatpush.bf16.msra.mxu0 0
    %361 = vmatpush.bf16.msra.mxu0 0
    %362 = vmatpush.bf16.msra.mxu0 0
    %363 = vmatpush.bf16.msra.mxu0 0
    %364 = vmatpush.bf16.msra.mxu0 0
    %365 = vmatpush.bf16.msra.mxu0 %v351
    %366 = vmatmul.bf16.gmra.mxu0 %v356
    %v367 = vpop.f32.mrf.mxu0
    %v368 = vadd.f32 0.0, %v367
    %v369 = vpop.f32.mrf.mxu0
    %370 = vdwg.mxu0
    %371 = vmatpush.bf16.msra.mxu0 0
    %372 = vmatpush.bf16.msra.mxu0 0
    %373 = vmatpush.bf16.msra.mxu0 0
    %374 = vmatpush.bf16.msra.mxu0 0
    %375 = vmatpush.bf16.msra.mxu0 0
    %376 = vmatpush.bf16.msra.mxu0 0
    %377 = vmatpush.bf16.msra.mxu0 0
    %378 = vmatpush.bf16.msra.mxu0 %v352
    %379 = vmatmul.bf16.gmra.mxu0 %v356
    %v380 = vpop.f32.mrf.mxu0
    %v381 = vadd.f32 0.0, %v380
    %v382 = vpop.f32.mrf.mxu0
    %383 = vdwg.mxu0
    %v386 = vunpack.c.l.b16 %v71
    %v387 = vunpack.c.h.b16 %v71
    %v388 = vunpack.c.l.b16 %v72
    %v389 = vunpack.c.h.b16 %v72
    %v390 = vpack.c.b16 %v388, %v386
    %v391 = vpack.c.b16 %v389, %v387
    %v395 = vsel %vm320, %v344, 0
    %397 = vmatpush.bf16.msra.mxu0 0
    %398 = vmatpush.bf16.msra.mxu0 0
    %399 = vmatpush.bf16.msra.mxu0 0
    %400 = vmatpush.bf16.msra.mxu0 0
    %401 = vmatpush.bf16.msra.mxu0 0
    %402 = vmatpush.bf16.msra.mxu0 0
    %403 = vmatpush.bf16.msra.mxu0 0
    %404 = vmatpush.bf16.msra.mxu0 %v390
    %405 = vmatmul.bf16.gmra.mxu0 %v395
    %v406 = vpop.f32.mrf.mxu0
    %v407 = vadd.f32 0.0, %v406
    %v408 = vpop.f32.mrf.mxu0
    %409 = vdwg.mxu0
    %410 = vmatpush.bf16.msra.mxu0 0
    %411 = vmatpush.bf16.msra.mxu0 0
    %412 = vmatpush.bf16.msra.mxu0 0
    %413 = vmatpush.bf16.msra.mxu0 0
    %414 = vmatpush.bf16.msra.mxu0 0
    %415 = vmatpush.bf16.msra.mxu0 0
    %416 = vmatpush.bf16.msra.mxu0 0
    %417 = vmatpush.bf16.msra.mxu0 %v391
    %418 = vmatmul.bf16.gmra.mxu0 %v395
    %v419 = vpop.f32.mrf.mxu0
    %v420 = vadd.f32 0.0, %v419
    %v421 = vpop.f32.mrf.mxu0
    %422 = vdwg.mxu0
    %v423 = vrot.slane %v323, 4
    %v424 = vmax.f32 %v323, %v423
    %v425 = vrot.slane %v424, 2
    %v426 = vmax.f32 %v424, %v425
    %v427 = vrot.slane %v426, 1
    %v428 = vmax.f32 %v426, %v427
    %v429 = vrot.slane %v326, 4
    %v430 = vmax.f32 %v326, %v429
    %v431 = vrot.slane %v430, 2
    %v432 = vmax.f32 %v430, %v431
    %v433 = vrot.slane %v432, 1
    %v434 = vmax.f32 %v432, %v433
    %v435 = vsub.f32 %v323, %v428
    %v436 = vsub.f32 %v326, %v434
    %v437 = vmul.f32 %v435, 1.442695
    %v438 = vpow.pop %v437
    %v439 = vmul.f32 %v436, 1.442695
    %v440 = vpow.pop %v439
    %v441 = vrot.slane %v438, 4
    %v442 = vadd.f32 %v438, %v441
    %v443 = vrot.slane %v442, 2
    %v444 = vadd.f32 %v442, %v443
    %v445 = vrot.slane %v444, 1
    %v446 = vadd.f32 %v444, %v445
    %v447 = vrot.slane %v440, 4
    %v448 = vadd.f32 %v440, %v447
    %v449 = vrot.slane %v448, 2
    %v450 = vadd.f32 %v448, %v449
    %v451 = vrot.slane %v450, 1
    %v452 = vadd.f32 %v450, %v451
    %v453 = vrcp.pop %v446
    %v454 = vrcp.pop %v452
    %v455 = vmul.f32 %v438, %v453
    %v456 = vmul.f32 %v440, %v454
    %v457 = vmul.f32 %v455, %v73
    %v458 = vmul.f32 %v455, %v74
    %v459 = vmul.f32 %v456, %v75
    %v460 = vmul.f32 %v456, %v76
    %v461 = vrot.slane %v457, 4
    %v462 = vadd.f32 %v457, %v461
    %v463 = vrot.slane %v462, 2
    %v464 = vadd.f32 %v462, %v463
    %v465 = vrot.slane %v464, 1
    %v466 = vadd.f32 %v464, %v465
    %v467 = vsel %vm117, %v458, 0.0
    %v468 = vrot.slane %v467, 4
    %v469 = vadd.f32 %v467, %v468
    %v470 = vrot.slane %v469, 2
    %v471 = vadd.f32 %v469, %v470
    %v472 = vrot.slane %v471, 1
    %v473 = vadd.f32 %v471, %v472
    %v474 = vrot.slane %v459, 4
    %v475 = vadd.f32 %v459, %v474
    %v476 = vrot.slane %v475, 2
    %v477 = vadd.f32 %v475, %v476
    %v478 = vrot.slane %v477, 1
    %v479 = vadd.f32 %v477, %v478
    %v480 = vsel %vm117, %v460, 0.0
    %v481 = vrot.slane %v480, 4
    %v482 = vadd.f32 %v480, %v481
    %v483 = vrot.slane %v482, 2
    %v484 = vadd.f32 %v482, %v483
    %v485 = vrot.slane %v484, 1
    %v486 = vadd.f32 %v484, %v485
    %vm487 = vcmask 1043456
    %vm488 = vcmask 588804
    %vm489 = vmor %vm488, %vm487
    %490 = vst.msk [vmem:[#allocation9] sm:$0xff] %vm489, %v67
    %491 = vst.msk [vmem:[#allocation9 + $0x8] sm:$0xff] %vm489, %v68
    %v492 = vpack.c.bf16 %v381, %v368
    %v493 = vpack.c.bf16 %v420, %v407
    %s494 = scalar_lea.vmem [#allocation9], 16
    %495 = vst.msk [vmem:[%s494] sm:$0xff] %vm489, %v492
    %496 = vst.msk [vmem:[%s494 + $0x8] sm:$0xff] %vm489, %v493
    %v497 = vmul.f32 %v73, %v368
    %v498 = vmul.f32 %v74, %v381
    %v499 = vmul.f32 %v75, %v407
    %v500 = vmul.f32 %v76, %v420
    %v501 = vpack.c.bf16 %v498, %v497
    %v502 = vpack.c.bf16 %v500, %v499
    %s503 = scalar_lea.vmem [#allocation9], 32
    %504 = vst.msk [vmem:[%s503] sm:$0xff] %vm489, %v501
    %505 = vst.msk [vmem:[%s503 + $0x8] sm:$0xff] %vm489, %v502
    %v506 = vmul.f32 %v73, %v466
    %v507 = vmul.f32 %v74, %v473
    %v508 = vmul.f32 %v75, %v479
    %v509 = vmul.f32 %v76, %v486
    %v510 = vpack.c.bf16 %v507, %v506
    %v511 = vpack.c.bf16 %v509, %v508
    %s512 = scalar_lea.vmem [#allocation9], 48
    %513 = vst.msk [vmem:[%s512] sm:$0xff] %vm489, %v510
    %514 = vst.msk [vmem:[%s512 + $0x8] sm:$0xff] %vm489, %v511
    %vm515 = vcmask 7168
    %516 = vst.msk [vmem:[%s5] sm:$0xff] %vm515, %v455
    %517 = vst.msk [vmem:[%s5 + $0x8] sm:$0xff] %vm515, %v456
    // Predicated region
    $region30: #{tpu_custom_call.1} parent=1 // pred_check
      _
    $region31: #{tpu_custom_call.1} parent=1 // pred_check_branch
      %519 = sbr.rel (0) target = $region33
    $region32: #{tpu_custom_call.1} parent=1 // pred_region
      %521 = vsyncadd [#allocation5], 0
      %s522 = sshll.u32 [#allocation9], 4
      %s523 = int_to_ptr.vmem [resolvable:$true] %s522
      %s524 = sshll.u32 %s4, 4
      %s525 = int_to_ptr.hbm [resolvable:$true] %s524
      %530 = dma.vmem_to_hbm [thread:$0]  %s523, 1024, %s525, [#allocation5], 128, 128, 8
    $region33: #{tpu_custom_call.1} parent=1 // pred_fallthru
      _
    // Predicated region
    $region34: #{tpu_custom_call.1} parent=1 // pred_check
      _
    $region35: #{tpu_custom_call.1} parent=1 // pred_check_branch
      %532 = sbr.rel (0) target = $region37
    $region36: #{tpu_custom_call.1} parent=1 // pred_region
      _
    $region37: #{tpu_custom_call.1} parent=1 // pred_fallthru
      _
    // Predicated region
    $region38: #{tpu_custom_call.1} parent=1 // pred_check
      _
    $region39: #{tpu_custom_call.1} parent=1 // pred_check_branch
      %534 = sbr.rel (0) target = $region41
    $region40: #{tpu_custom_call.1} parent=1 // pred_region
      %536 = dma.done [#allocation5], 1024
    $region41: #{tpu_custom_call.1} parent=1 // pred_fallthru
      _
    // Predicated region
    $region42: #{tpu_custom_call.1} parent=1 // pred_check
      _
    $region43: #{tpu_custom_call.1} parent=1 // pred_check_branch
      %538 = sbr.rel (0) target = $region45
    $region44: #{tpu_custom_call.1} parent=1 // pred_region
      _
    $region45: #{tpu_custom_call.1} parent=1 // pred_fallthru
      _
    %539 = vsyncpa [#allocation4], 1
    %540 = vsyncpa [#allocation7], 1
    %541 = vsyncpa [#allocation5], 1

</llo_original>
